<compile_context>
chip_gen: v6e
topology: v6e:2x2x1
jax: 0.10.0
libtpu: 0.0.40
codegen_flags: <defaults>
</compile_context>

<pallas_src>
import jax
import jax.numpy as jnp
from jax.experimental import pallas as pl
from jax.experimental.pallas import tpu as pltpu

_LANE = 128      # TPU vreg lane width
_TILE_N = 512    # batch tile (lanes) for the gridded path


def _make_linear_relu_kernel(in_f: int):
    """VPU-only kernel: y = relu(sum_k w[k] * x[k, :] + b)."""

    def kernel(w_ref, b_ref, x_ref, o_ref):
        # w_ref: SMEM (in_f,) f32, b_ref: SMEM (1,) f32
        # x_ref: VMEM (in_f, TN) f32  (features on sublanes, batch on lanes)
        # o_ref: VMEM (1, TN) f32
        acc = x_ref[0:1, :] * w_ref[0]
        for k in range(1, in_f):               # static unroll (in_f == 2)
            acc = acc + x_ref[k:k + 1, :] * w_ref[k]
        o_ref[...] = jnp.maximum(acc + b_ref[0], 0.0)

    return kernel


def linear_regression_forward(x, weight, bias, *, tile_n=_TILE_N):
    """Forward of LinearRegressionModel: relu(x @ weight.T + bias).

    x:      (N, in_f) f32       (PyTorch nn.Linear input layout)
    weight: (out_f, in_f) f32   (PyTorch layout), out_f == 1
    bias:   (out_f,) f32
    returns (N, out_f) f32
    """
    n, in_f = x.shape
    out_f = weight.shape[0]

    # Lane-dense layout plumbing: batch on lanes, features on sublanes.
    x_t = jnp.asarray(x, jnp.float32).T                       # (in_f, N)
    w_flat = jnp.asarray(weight, jnp.float32).reshape(in_f)   # -> SMEM
    b_flat = jnp.asarray(bias, jnp.float32).reshape(out_f)    # -> SMEM

    kernel = _make_linear_relu_kernel(in_f)
    smem_spec = pl.BlockSpec(memory_space=pltpu.MemorySpace.SMEM)

    if n <= tile_n:
        # Single full block, no grid / pipeline machinery.  Pad the batch to a
        # multiple of 128 lanes so stores are full-width, unmasked vst.
        n_pad = max(_LANE, pl.cdiv(n, _LANE) * _LANE)
        if n_pad != n:
            x_t = jnp.pad(x_t, ((0, 0), (0, n_pad - n)))
        out_t = pl.pallas_call(
            kernel,
            out_shape=jax.ShapeDtypeStruct((out_f, n_pad), jnp.float32),
            in_specs=[
                smem_spec,                                              # weight
                smem_spec,                                              # bias
                pl.BlockSpec(memory_space=pltpu.MemorySpace.VMEM),      # x
            ],
            out_specs=pl.BlockSpec(memory_space=pltpu.MemorySpace.VMEM),
        )(w_flat, b_flat, x_t)
    else:
        # Tile only over the batch (lane) axis; weight/bias stay un-tiled in
        # SMEM.  Buffered footprint ~ 2*(in_f+out_f)*tile_n*4 B — tiny vs the
        # 32 MiB scoped / 64 MiB physical VMEM budget on v7x.
        n_pad = pl.cdiv(n, tile_n) * tile_n
        if n_pad != n:
            x_t = jnp.pad(x_t, ((0, 0), (0, n_pad - n)))
        out_t = pl.pallas_call(
            kernel,
            out_shape=jax.ShapeDtypeStruct((out_f, n_pad), jnp.float32),
            grid=(n_pad // tile_n,),
            in_specs=[
                smem_spec,
                smem_spec,
                pl.BlockSpec((in_f, tile_n), lambda i: (0, i)),
            ],
            out_specs=pl.BlockSpec((out_f, tile_n), lambda i: (0, i)),
            compiler_params=pltpu.CompilerParams(
                dimension_semantics=("parallel",)),    # 2-TC shard on v7x
        )(w_flat, b_flat, x_t)

    # Back to the PyTorch output layout (N, out_f).
    return out_t[:, :n].T


if __name__ == "__main__":
    key = jax.random.PRNGKey(0)
    k_x, k_w, k_x2 = jax.random.split(key, 3)

    # Parameters mirroring _initialize_weights(): weight ~ N(0, 0.1), bias = 0.
    weight = 0.1 * jax.random.normal(k_w, (1, 2), dtype=jnp.float32)
    bias = jnp.zeros((1,), dtype=jnp.float32)

    # Small batch -> grid-free single-block path.
    x = jax.random.normal(k_x, (8, 2), dtype=jnp.float32)
    out = jax.block_until_ready(linear_regression_forward(x, weight, bias))
    ref = jnp.maximum(x @ weight.T + bias, 0.0)
    assert out.shape == (8, 1)
    assert jnp.allclose(out, ref, atol=1e-5), "small-batch mismatch vs reference"

    # Larger (non-multiple) batch -> tiled, 'parallel' grid path.
    x_big = jax.random.normal(k_x2, (1061, 2), dtype=jnp.float32)
    out_big = jax.block_until_ready(linear_regression_forward(x_big, weight, bias))
    ref_big = jnp.maximum(x_big @ weight.T + bias, 0.0)
    assert out_big.shape == (1061, 1)
    assert jnp.allclose(out_big, ref_big, atol=1e-5), "tiled-batch mismatch vs reference"

    print("KERNEL_OK")
</pallas_src>

<mosaic_0001>
module attributes {stable_mosaic.version = 11 : i64} {
  func.func @kernel(%arg0: memref<2xf32, #tpu.memory_space<smem>>, %arg1: memref<1xf32, #tpu.memory_space<smem>>, %arg2: memref<2x128xf32, #tpu.memory_space<vmem>>, %arg3: memref<1x128xf32, #tpu.memory_space<vmem>>) attributes {dimension_semantics = [], scalar_prefetch = 0 : i64, scratch_operands = 0 : i64, tpu.core_type = #tpu.core_type<tc>} {
    %c0 = arith.constant 0 : index
    %c0_0 = arith.constant 0 : index
    %0 = vector.load %arg2[%c0, %c0_0] : memref<2x128xf32, #tpu.memory_space<vmem>>, vector<1x128xf32>
    %c0_1 = arith.constant 0 : index
    %1 = memref.load %arg0[%c0_1] : memref<2xf32, #tpu.memory_space<smem>>
    %2 = vector.broadcast %1 : f32 to vector<1x128xf32>
    %3 = arith.mulf %0, %2 : vector<1x128xf32>
    %c1 = arith.constant 1 : index
    %c0_2 = arith.constant 0 : index
    %4 = vector.load %arg2[%c1, %c0_2] : memref<2x128xf32, #tpu.memory_space<vmem>>, vector<1x128xf32>
    %c1_3 = arith.constant 1 : index
    %5 = memref.load %arg0[%c1_3] : memref<2xf32, #tpu.memory_space<smem>>
    %6 = vector.broadcast %5 : f32 to vector<1x128xf32>
    %7 = arith.mulf %4, %6 : vector<1x128xf32>
    %8 = arith.addf %3, %7 : vector<1x128xf32>
    %c0_4 = arith.constant 0 : index
    %9 = memref.load %arg1[%c0_4] : memref<1xf32, #tpu.memory_space<smem>>
    %10 = vector.broadcast %9 : f32 to vector<1x128xf32>
    %11 = arith.addf %8, %10 : vector<1x128xf32>
    %cst = arith.constant 0.000000e+00 : f32
    %12 = vector.broadcast %cst : f32 to vector<1x128xf32>
    %13 = arith.maximumf %11, %12 : vector<1x128xf32>
    %c0_5 = arith.constant 0 : index
    %c0_6 = arith.constant 0 : index
    %14 = vector.load %arg3[%c0_5, %c0_6] : memref<1x128xf32, #tpu.memory_space<vmem>>, vector<1x128xf32>
    tpu.vector_store %arg3[%c0_5, %c0_6], %13 {strides = array<i32>} : memref<1x128xf32, #tpu.memory_space<vmem>>, vector<1x128xf32>,
    return
  }
}

</mosaic_0001>

<llo_original>
// kernel: tpu_custom_call.1
$region0: #{tpu_custom_call.1}
  #allocation0 [shape = 'u32[]', space=smem, size = 0x4, offset = 0x4, fixed_abs, tag = 'smem constant byte address 0x4 - core index']
  #allocation1 [shape = 'u32[144,128]{1,0:T(1,128)}', space=vmem, size = 0x12000, scoped, tag = 'internal scratch']
  #allocation2 [shape = 'f32[1]{0:T(128)S(6)}', space=smem, size = 0x200, scoped, tag = 'scoped memory for tpu_custom_call.1']
  %s0 = inlined_call_operand.vmem [shape: f32[2], index: 0, kind: input, shape index: {}]
  %s1 = inlined_call_operand.<no memory space> [shape: f32[1], index: 1, kind: input, shape index: {}]
  %s2 = inlined_call_operand.vmem [shape: f32[2,128], index: 2, kind: input, shape index: {}]
  %s3 = inlined_call_operand.hbm [shape: f32[1,128], index: 3, kind: output, shape index: {}]
  %s4 = sld [smem:[#allocation0]]
  $region26: #{tpu_custom_call.1} parent=0
    _
  %s6 = ssub.s32 1, %s4
  %s7 = scalar_select 0, %s6, %s4
  %8 = sst [smem:[#allocation2]] %s1
  $region1: #{tpu_custom_call.1} parent=0
    #allocation3 [shape = 'u8[512]{0}', space=smem, size = 0x200, scoped, tag = 'input window, operand 0, single buffered']
    #allocation4 [shape = 's32[1]{0}', space=sflag, size = 0x4, scoped, tag = 'scoped memory for tpu_custom_call.1']
    #allocation5 [shape = 's32[1]{0}', space=sflag, size = 0x4, scoped, tag = 'scoped memory for tpu_custom_call.1']
    #allocation6 [shape = 'u8[512]{0}', space=vmem, size = 0x400, scoped, tag = 'output window, operand 0, single buffered']
    %9 = vsyncpa [#allocation5], 0
    %10 = vsyncpa [#allocation4], 0
    // Predicated region
    $region2: #{tpu_custom_call.1} parent=1 // pred_check
      _
    $region3: #{tpu_custom_call.1} parent=1 // pred_check_branch
      %12 = sbr.rel (0) target = $region5
    $region4: #{tpu_custom_call.1} parent=1 // pred_region
      %s14 = ssub.s32 16, 16
      %15 = vsyncadd [#allocation5], %s14
      %s17 = sshll.u32 %s0, 4
      %s18 = int_to_ptr.vmem [resolvable:$true] %s17
      %20 = dma.vmem_to_smem %s18, 16, [#allocation3], [#allocation5]
    $region5: #{tpu_custom_call.1} parent=1 // pred_fallthru
      _
    // Predicated region
    $region6: #{tpu_custom_call.1} parent=1 // pred_check
      _
    $region7: #{tpu_custom_call.1} parent=1 // pred_check_branch
      %22 = sbr.rel (0) target = $region9
    $region8: #{tpu_custom_call.1} parent=1 // pred_region
      _
    $region9: #{tpu_custom_call.1} parent=1 // pred_fallthru
      _
    // Predicated region
    $region10: #{tpu_custom_call.1} parent=1 // pred_check
      _
    $region11: #{tpu_custom_call.1} parent=1 // pred_check_branch
      %24 = sbr.rel (0) target = $region13
    $region12: #{tpu_custom_call.1} parent=1 // pred_region
      _
    $region13: #{tpu_custom_call.1} parent=1 // pred_fallthru
      _
    // Predicated region
    $region14: #{tpu_custom_call.1} parent=1 // pred_check
      _
    $region15: #{tpu_custom_call.1} parent=1 // pred_check_branch
      %26 = sbr.rel (0) target = $region17
    $region16: #{tpu_custom_call.1} parent=1 // pred_region
      %27 = dma.done [#allocation5], 16
    $region17: #{tpu_custom_call.1} parent=1 // pred_fallthru
      _
    %28 = sfence
    %v29 = vld [vmem:[%s2] sm:$0x1]
    %s30 = sld [smem:[#allocation3]]
    %v31 = vstv %s30
    %v32 = vmul.f32 %v29, %v31
    %v33 = vld [vmem:[%s2 + $0x1] sm:$0x1]
    %s34 = sld [smem:[#allocation3 + $0x1]]
    %v35 = vstv %s34
    %v36 = vmul.f32 %v33, %v35
    %v37 = vadd.f32 %v32, %v36
    %s38 = sld [smem:[#allocation2]]
    %v39 = vstv %s38
    %v40 = vadd.f32 %v37, %v39
    %v41 = vmax.f32 %v40, 0.0
    %42 = vst [vmem:[#allocation6] sm:$0x1] %v41
    // Predicated region
    $region18: #{tpu_custom_call.1} parent=1 // pred_check
      _
    $region19: #{tpu_custom_call.1} parent=1 // pred_check_branch
      %44 = sbr.rel (0) target = $region21
    $region20: #{tpu_custom_call.1} parent=1 // pred_region
      %s46 = ssub.s32 16, 16
      %47 = vsyncadd [#allocation4], %s46
      %s49 = sshll.u32 [#allocation6], 4
      %s50 = int_to_ptr.vmem [resolvable:$true] %s49
      %52 = dma.vmem_to_hbm [thread:$0]  %s50, 16, %s3, [#allocation4]
    $region21: #{tpu_custom_call.1} parent=1 // pred_fallthru
      _
    // Predicated region
    $region22: #{tpu_custom_call.1} parent=1 // pred_check
      _
    $region23: #{tpu_custom_call.1} parent=1 // pred_check_branch
      %54 = sbr.rel (0) target = $region25
    $region24: #{tpu_custom_call.1} parent=1 // pred_region
      %55 = dma.done [#allocation4], 16
    $region25: #{tpu_custom_call.1} parent=1 // pred_fallthru
      _
    %56 = vsyncpa [#allocation4], 1
    %57 = vsyncpa [#allocation5], 1

</llo_original>
